<compile_context>
chip_gen: v7x
topology: tpu7x:2x2x1
jax: 0.10.0
libtpu: 0.0.40
codegen_flags: <defaults>
</compile_context>

<pallas_src>
import functools

import jax
import jax.numpy as jnp
from jax.experimental import pallas as pl
from jax.experimental.pallas import tpu as pltpu

LANE = 128


def _round_up(x, m):
    return (x + m - 1) // m * m


def _pad2(a, rows, cols):
    return jnp.pad(a, ((0, rows - a.shape[0]), (0, cols - a.shape[1])))


def _vmem_capacity_bytes():
    """Generation-aware VMEM capacity (conservative fallback if query fails)."""
    try:
        info = pltpu.get_tpu_info()
        cap = getattr(info, "vmem_capacity_bytes", None)
        if cap:
            return int(cap)
    except Exception:
        pass
    return 64 * 1024 * 1024  # safe on every generation (v7x has 64 MiB)


# ---------------------------------------------------------------------------
# Fast path: fully fused GNN in a single (grid-less) pallas_call.
#   relu(A @ (X@W1) + b1) -> relu(A @ (.@W2) + b2) -> masked mean -> FC (f32)
# ---------------------------------------------------------------------------
def _fused_gnn_kernel(a_ref, x_ref, w1_ref, b1_ref, w2_ref, b2_ref,
                      wf_ref, bf_ref, m_ref, o_ref, *, inv_n):
    z1 = jnp.dot(x_ref[...], w1_ref[...],
                 preferred_element_type=jnp.float32).astype(jnp.bfloat16)
    h1 = jnp.maximum(jnp.dot(a_ref[...], z1,
                             preferred_element_type=jnp.float32) + b1_ref[...],
                     0.0).astype(jnp.bfloat16)
    z2 = jnp.dot(h1, w2_ref[...],
                 preferred_element_type=jnp.float32).astype(jnp.bfloat16)
    h2 = jnp.maximum(jnp.dot(a_ref[...], z2,
                             preferred_element_type=jnp.float32) + b2_ref[...],
                     0.0).astype(jnp.bfloat16)
    # Masked mean-pool on the MXU; pooled vector stays f32 for the final FC.
    pooled = jnp.dot(m_ref[...], h2, preferred_element_type=jnp.float32) * inv_n
    o_ref[...] = jnp.dot(pooled, wf_ref[...],
                         preferred_element_type=jnp.float32) + bf_ref[...]


def _fused_gnn(a_hat, x, w1, b1, w2, b2, wf, bf, mask, n_real, cout_p,
               vmem_limit):
    kernel = functools.partial(_fused_gnn_kernel, inv_n=1.0 / n_real)
    return pl.pallas_call(
        kernel,
        out_shape=jax.ShapeDtypeStruct((1, cout_p), jnp.float32),
        compiler_params=pltpu.CompilerParams(vmem_limit_bytes=vmem_limit),
    )(a_hat, x, w1, b1, w2, b2, wf, bf, mask)


def _fused_vmem_estimate(n_pad, cin_p, h_p, cout_p):
    a = 2 * n_pad * n_pad * 2                 # A_hat bf16, double buffered
    xio = 2 * n_pad * cin_p * 2               # X bf16
    interm = 4 * n_pad * h_p * 4              # h1/z2/h2 f32 temporaries + slack
    w = 2 * ((cin_p * h_p + h_p * h_p) * 2 + h_p * cout_p * 4)
    misc = 2 * (2 * h_p * 4 + cout_p * 4 + n_pad * 2) + 2 * cout_p * 4
    return a + xio + interm + w + misc


# ---------------------------------------------------------------------------
# Tiled path: one kernel per GCN layer (grid = (row tiles, K tiles)).
#   The X@W transform is fused (recomputed per k tile); the layer-2 kernel also
#   fuses the masked mean-pool as per-row-tile partials.
# ---------------------------------------------------------------------------
def _gcn_accumulate(a_ref, x_ref, w_ref, acc_ref, *, tk, resident):
    k = pl.program_id(1)

    @pl.when(k == 0)
    def _():
        acc_ref[...] = jnp.zeros_like(acc_ref)

    if resident:  # full X/H1 resident in VMEM; slice the k-tile locally.
        x_blk = x_ref[pl.ds(pl.multiple_of(k * tk, 128), tk), :]
    else:         # streamed (tk, C) block per k.
        x_blk = x_ref[...]

    z = jnp.dot(x_blk, w_ref[...],
                preferred_element_type=jnp.float32).astype(jnp.bfloat16)
    acc_ref[...] += jnp.dot(a_ref[...], z, preferred_element_type=jnp.float32)


def _gcn_layer_kernel(a_ref, x_ref, w_ref, b_ref, o_ref, acc_ref,
                      *, tk, resident):
    _gcn_accumulate(a_ref, x_ref, w_ref, acc_ref, tk=tk, resident=resident)

    @pl.when(pl.program_id(1) == pl.num_programs(1) - 1)
    def _():
        o_ref[...] = jnp.maximum(acc_ref[...] + b_ref[...], 0.0).astype(o_ref.dtype)


def _gcn_layer_pool_kernel(a_ref, x_ref, w_ref, b_ref, m_ref, o_ref, acc_ref,
                           *, tk, resident):
    _gcn_accumulate(a_ref, x_ref, w_ref, acc_ref, tk=tk, resident=resident)

    @pl.when(pl.program_id(1) == pl.num_programs(1) - 1)
    def _():
        h = jnp.maximum(acc_ref[...] + b_ref[...], 0.0).astype(jnp.bfloat16)
        # (1, tm) @ (tm, Hp) on the MXU -> per-row-tile pooled partial (f32).
        o_ref[...] = jnp.dot(m_ref[...], h, preferred_element_type=jnp.float32)


def _layer_specs(n_pad, cols_in, h_p, tm, tk, resident):
    a_spec = pl.BlockSpec((tm, tk), lambda i, k: (i, k))
    if resident:
        x_spec = pl.BlockSpec((n_pad, cols_in), lambda i, k: (0, 0))
    else:
        x_spec = pl.BlockSpec((tk, cols_in), lambda i, k: (k, 0))
    w_spec = pl.BlockSpec((cols_in, h_p), lambda i, k: (0, 0))
    b_spec = pl.BlockSpec((1, h_p), lambda i, k: (0, 0))
    return a_spec, x_spec, w_spec, b_spec


def _gcn_layer(a_hat, xin, w, b, *, tm, tk, resident, vmem_limit):
    n_pad = a_hat.shape[0]
    cols_in = xin.shape[1]
    h_p = w.shape[1]
    num_i, num_k = n_pad // tm, n_pad // tk
    a_spec, x_spec, w_spec, b_spec = _layer_specs(n_pad, cols_in, h_p, tm, tk,
                                                  resident)
    kernel = functools.partial(_gcn_layer_kernel, tk=tk, resident=resident)
    return pl.pallas_call(
        kernel,
        out_shape=jax.ShapeDtypeStruct((n_pad, h_p), jnp.bfloat16),
        grid_spec=pltpu.PrefetchScalarGridSpec(
            num_scalar_prefetch=0,
            grid=(num_i, num_k),
            in_specs=[a_spec, x_spec, w_spec, b_spec],
            out_specs=pl.BlockSpec((tm, h_p), lambda i, k: (i, 0)),
            scratch_shapes=[pltpu.VMEM((tm, h_p), jnp.float32)]),
        compiler_params=pltpu.CompilerParams(
            dimension_semantics=("parallel", "arbitrary"),
            vmem_limit_bytes=vmem_limit),
        cost_estimate=pl.CostEstimate(
            flops=2 * n_pad * n_pad * h_p + 2 * num_i * n_pad * cols_in * h_p,
            transcendentals=0,
            bytes_accessed=2 * n_pad * n_pad
            + 2 * n_pad * cols_in * (1 if resident else num_i)
            + 2 * n_pad * h_p),
    )(a_hat, xin, w, b)


def _gcn_layer_pool(a_hat, xin, w, b, mask, *, tm, tk, resident, vmem_limit):
    n_pad = a_hat.shape[0]
    cols_in = xin.shape[1]
    h_p = w.shape[1]
    num_i, num_k = n_pad // tm, n_pad // tk
    a_spec, x_spec, w_spec, b_spec = _layer_specs(n_pad, cols_in, h_p, tm, tk,
                                                  resident)
    m_spec = pl.BlockSpec((1, tm), lambda i, k: (0, i))
    kernel = functools.partial(_gcn_layer_pool_kernel, tk=tk, resident=resident)
    return pl.pallas_call(
        kernel,
        out_shape=jax.ShapeDtypeStruct((num_i, h_p), jnp.float32),
        grid_spec=pltpu.PrefetchScalarGridSpec(
            num_scalar_prefetch=0,
            grid=(num_i, num_k),
            in_specs=[a_spec, x_spec, w_spec, b_spec, m_spec],
            out_specs=pl.BlockSpec((1, h_p), lambda i, k: (i, 0)),
            scratch_shapes=[pltpu.VMEM((tm, h_p), jnp.float32)]),
        compiler_params=pltpu.CompilerParams(
            dimension_semantics=("parallel", "arbitrary"),
            vmem_limit_bytes=vmem_limit),
        cost_estimate=pl.CostEstimate(
            flops=2 * n_pad * n_pad * h_p + 2 * num_i * n_pad * cols_in * h_p
            + 2 * n_pad * h_p,
            transcendentals=0,
            bytes_accessed=2 * n_pad * n_pad
            + 2 * n_pad * cols_in * (1 if resident else num_i)
            + 4 * num_i * h_p),
    )(a_hat, xin, w, b, mask)


# ---------------------------------------------------------------------------
# Forward pass glue.
# ---------------------------------------------------------------------------
def gnn_forward(x, edge_index, params):
    """x: [N, Cin] float32, edge_index: [2, E] int32 -> [Cout] float32."""
    n, cin = x.shape
    hidden = params["w1"].shape[1]
    cout = params["wf"].shape[1]

    cin_p = _round_up(cin, LANE)
    h_p = _round_up(hidden, LANE)
    cout_p = _round_up(cout, LANE)

    cap = _vmem_capacity_bytes()
    vmem_limit = min(cap * 3 // 4, 96 * 1024 * 1024)

    # ---- dispatch: fully-fused fast path vs. tiled path --------------------
    n_pad_f = _round_up(n, LANE)
    use_fused = (n_pad_f <= 2048 and
                 _fused_vmem_estimate(n_pad_f, cin_p, h_p, cout_p) <= cap // 2)
    if use_fused:
        n_pad = n_pad_f
        tm = tk = n_pad  # unused
    else:
        n_pad = _round_up(n, 256)            # cap padding waste at <256 rows
        tm = 512 if n_pad % 512 == 0 else 256
        tk = next(t for t in (2048, 1024, 512, 256) if n_pad % t == 0)

    # ---- normalized adjacency A_hat = D^-1/2 (A~ + I) D^-1/2 ---------------
    # PyG gcn_norm semantics: existing self loops are dropped, exactly one
    # self loop (weight 1) is added per node, multi-edges accumulate.
    # Single scatter-add directly into the padded bf16 buffer (normalization
    # folded into the scattered edge weights) -- no dense N^2 passes.
    src = edge_index[0].astype(jnp.int32)
    dst = edge_index[1].astype(jnp.int32)
    keep = (src != dst).astype(jnp.float32)
    loop = jnp.arange(n, dtype=jnp.int32)
    src_all = jnp.concatenate([src, loop])
    dst_all = jnp.concatenate([dst, loop])
    w_all = jnp.concatenate([keep, jnp.ones((n,), jnp.float32)])
    deg = jnp.zeros((n,), jnp.float32).at[dst_all].add(w_all)   # >= 1 always
    dinv = jax.lax.rsqrt(deg)
    edge_w = (w_all * dinv[dst_all] * dinv[src_all]).astype(jnp.bfloat16)
    a_hat = jnp.zeros((n_pad, n_pad), jnp.bfloat16).at[dst_all, src_all].add(edge_w)

    # ---- padded / cast operands --------------------------------------------
    x_p = _pad2(x, n_pad, cin_p).astype(jnp.bfloat16)
    w1 = _pad2(params["w1"], cin_p, h_p).astype(jnp.bfloat16)
    b1 = _pad2(params["b1"], 1, h_p).astype(jnp.float32)
    w2 = _pad2(params["w2"], h_p, h_p).astype(jnp.bfloat16)
    b2 = _pad2(params["b2"], 1, h_p).astype(jnp.float32)
    wf = _pad2(params["wf"], h_p, cout_p).astype(jnp.float32)   # FC stays f32
    bf = _pad2(params["bf"], 1, cout_p).astype(jnp.float32)

    # Padded rows of H end up as relu(bias) != 0; mask keeps them out of mean.
    row_mask = (jnp.arange(n_pad) < n).astype(jnp.bfloat16).reshape(1, n_pad)

    if use_fused:
        out = _fused_gnn(a_hat, x_p, w1, b1, w2, b2, wf, bf, row_mask,
                         n, cout_p, vmem_limit)
        return out[0, :cout]

    # ---- tiled path ---------------------------------------------------------
    resident1 = 2 * n_pad * cin_p * 2 <= cap // 4
    resident2 = 2 * n_pad * h_p * 2 <= cap // 4

    h1 = _gcn_layer(a_hat, x_p, w1, b1, tm=tm, tk=tk,
                    resident=resident1, vmem_limit=vmem_limit)
    partials = _gcn_layer_pool(a_hat, h1, w2, b2, row_mask, tm=tm, tk=tk,
                               resident=resident2, vmem_limit=vmem_limit)
    pooled = partials.sum(axis=0) * (1.0 / n)          # f32 (h_p,)
    out = pooled @ wf + bf[0]                          # tiny f32 FC
    return out[:cout]


# ---------------------------------------------------------------------------
# Pure-JAX reference (f32) for validation.
# ---------------------------------------------------------------------------
def _reference(x, edge_index, params):
    n = x.shape[0]
    src, dst = edge_index[0], edge_index[1]
    keep = (src != dst).astype(jnp.float32)
    loop = jnp.arange(n, dtype=edge_index.dtype)
    s = jnp.concatenate([src, loop])
    d = jnp.concatenate([dst, loop])
    w = jnp.concatenate([keep, jnp.ones((n,), jnp.float32)])
    deg = jnp.zeros((n,), jnp.float32).at[d].add(w)
    dinv = jax.lax.rsqrt(deg)
    a = jnp.zeros((n, n), jnp.float32).at[d, s].add(w * dinv[d] * dinv[s])
    h = jnp.maximum(a @ (x @ params["w1"]) + params["b1"], 0.0)
    h = jnp.maximum(a @ (h @ params["w2"]) + params["b2"], 0.0)
    pooled = h.mean(axis=0)
    return pooled @ params["wf"] + params["bf"][0]


def init_params(key, in_channels, hidden_channels, out_channels):
    k1, k2, k3 = jax.random.split(key, 3)
    scale1 = 1.0 / jnp.sqrt(in_channels)
    scale2 = 1.0 / jnp.sqrt(hidden_channels)
    return {
        "w1": jax.random.uniform(k1, (in_channels, hidden_channels),
                                 jnp.float32, -scale1, scale1),
        "b1": jnp.zeros((1, hidden_channels), jnp.float32),
        "w2": jax.random.uniform(k2, (hidden_channels, hidden_channels),
                                 jnp.float32, -scale2, scale2),
        "b2": jnp.zeros((1, hidden_channels), jnp.float32),
        "wf": jax.random.uniform(k3, (hidden_channels, out_channels),
                                 jnp.float32, -scale2, scale2),
        "bf": jnp.zeros((1, out_channels), jnp.float32),
    }


if __name__ == "__main__":
    N, E = 16, 40
    in_channels, hidden_channels, out_channels = 8, 32, 4

    key = jax.random.PRNGKey(0)
    kx, ke, kp = jax.random.split(key, 3)

    x = jax.random.normal(kx, (N, in_channels), jnp.float32)
    edge_index = jax.random.randint(ke, (2, E), 0, N, jnp.int32)
    params = init_params(kp, in_channels, hidden_channels, out_channels)

    out = jax.jit(gnn_forward)(x, edge_index, params)
    jax.block_until_ready(out)
    assert out.shape == (out_channels,)

    ref = _reference(x, edge_index, params)
    max_err = float(jnp.max(jnp.abs(out - ref)))
    assert max_err < 7.5e-2, (out, ref, max_err)   # bf16 operands, f32 accum
    print("KERNEL_OK")
</pallas_src>

<mosaic_0001>
module attributes {stable_mosaic.version = 11 : i64} {
  func.func @_fused_gnn_kernel(%arg0: memref<128x128xbf16, #tpu.memory_space<vmem>>, %arg1: memref<128x128xbf16, #tpu.memory_space<vmem>>, %arg2: memref<128x128xbf16, #tpu.memory_space<vmem>>, %arg3: memref<1x128xf32, #tpu.memory_space<vmem>>, %arg4: memref<128x128xbf16, #tpu.memory_space<vmem>>, %arg5: memref<1x128xf32, #tpu.memory_space<vmem>>, %arg6: memref<128x128xf32, #tpu.memory_space<vmem>>, %arg7: memref<1x128xf32, #tpu.memory_space<vmem>>, %arg8: memref<1x128xbf16, #tpu.memory_space<vmem>>, %arg9: memref<1x128xf32, #tpu.memory_space<vmem>>) attributes {dimension_semantics = [], scalar_prefetch = 0 : i64, scratch_operands = 0 : i64, tpu.core_type = #tpu.core_type<tc>} {
    %c0 = arith.constant 0 : index
    %c0_0 = arith.constant 0 : index
    %0 = vector.load %arg1[%c0, %c0_0] : memref<128x128xbf16, #tpu.memory_space<vmem>>, vector<128x128xbf16>
    %c0_1 = arith.constant 0 : index
    %c0_2 = arith.constant 0 : index
    %1 = vector.load %arg2[%c0_1, %c0_2] : memref<128x128xbf16, #tpu.memory_space<vmem>>, vector<128x128xbf16>
    %cst = arith.constant dense<0.000000e+00> : vector<128x128xf32>
    %2 = tpu.matmul %0, %1, %cst {dimension_numbers = #tpu.dot_dimension_numbers<[1], [0], [0], [1], [0, 0, 1, 1], [], []>} : vector<128x128xbf16>, vector<128x128xbf16>, vector<128x128xf32> -> vector<128x128xf32>
    %3 = arith.truncf %2 : vector<128x128xf32> to vector<128x128xbf16>
    %c0_3 = arith.constant 0 : index
    %c0_4 = arith.constant 0 : index
    %4 = vector.load %arg0[%c0_3, %c0_4] : memref<128x128xbf16, #tpu.memory_space<vmem>>, vector<128x128xbf16>
    %cst_5 = arith.constant dense<0.000000e+00> : vector<128x128xf32>
    %5 = tpu.matmul %4, %3, %cst_5 {dimension_numbers = #tpu.dot_dimension_numbers<[1], [0], [0], [1], [0, 0, 1, 1], [], []>} : vector<128x128xbf16>, vector<128x128xbf16>, vector<128x128xf32> -> vector<128x128xf32>
    %c0_6 = arith.constant 0 : index
    %c0_7 = arith.constant 0 : index
    %6 = vector.load %arg3[%c0_6, %c0_7] : memref<1x128xf32, #tpu.memory_space<vmem>>, vector<1x128xf32>
    %7 = vector.broadcast %6 : vector<1x128xf32> to vector<128x128xf32>
    %8 = arith.addf %5, %7 : vector<128x128xf32>
    %cst_8 = arith.constant 0.000000e+00 : f32
    %9 = vector.broadcast %cst_8 : f32 to vector<128x128xf32>
    %10 = arith.maximumf %8, %9 : vector<128x128xf32>
    %11 = arith.truncf %10 : vector<128x128xf32> to vector<128x128xbf16>
    %c0_9 = arith.constant 0 : index
    %c0_10 = arith.constant 0 : index
    %12 = vector.load %arg4[%c0_9, %c0_10] : memref<128x128xbf16, #tpu.memory_space<vmem>>, vector<128x128xbf16>
    %cst_11 = arith.constant dense<0.000000e+00> : vector<128x128xf32>
    %13 = tpu.matmul %11, %12, %cst_11 {dimension_numbers = #tpu.dot_dimension_numbers<[1], [0], [0], [1], [0, 0, 1, 1], [], []>} : vector<128x128xbf16>, vector<128x128xbf16>, vector<128x128xf32> -> vector<128x128xf32>
    %14 = arith.truncf %13 : vector<128x128xf32> to vector<128x128xbf16>
    %c0_12 = arith.constant 0 : index
    %c0_13 = arith.constant 0 : index
    %15 = vector.load %arg0[%c0_12, %c0_13] : memref<128x128xbf16, #tpu.memory_space<vmem>>, vector<128x128xbf16>
    %cst_14 = arith.constant dense<0.000000e+00> : vector<128x128xf32>
    %16 = tpu.matmul %15, %14, %cst_14 {dimension_numbers = #tpu.dot_dimension_numbers<[1], [0], [0], [1], [0, 0, 1, 1], [], []>} : vector<128x128xbf16>, vector<128x128xbf16>, vector<128x128xf32> -> vector<128x128xf32>
    %c0_15 = arith.constant 0 : index
    %c0_16 = arith.constant 0 : index
    %17 = vector.load %arg5[%c0_15, %c0_16] : memref<1x128xf32, #tpu.memory_space<vmem>>, vector<1x128xf32>
    %18 = vector.broadcast %17 : vector<1x128xf32> to vector<128x128xf32>
    %19 = arith.addf %16, %18 : vector<128x128xf32>
    %cst_17 = arith.constant 0.000000e+00 : f32
    %20 = vector.broadcast %cst_17 : f32 to vector<128x128xf32>
    %21 = arith.maximumf %19, %20 : vector<128x128xf32>
    %22 = arith.truncf %21 : vector<128x128xf32> to vector<128x128xbf16>
    %c0_18 = arith.constant 0 : index
    %c0_19 = arith.constant 0 : index
    %23 = vector.load %arg8[%c0_18, %c0_19] : memref<1x128xbf16, #tpu.memory_space<vmem>>, vector<1x128xbf16>
    %cst_20 = arith.constant dense<0.000000e+00> : vector<1x128xf32>
    %24 = tpu.matmul %23, %22, %cst_20 {dimension_numbers = #tpu.dot_dimension_numbers<[1], [0], [0], [1], [0, 0, 1, 1], [], []>} : vector<1x128xbf16>, vector<128x128xbf16>, vector<1x128xf32> -> vector<1x128xf32>
    %cst_21 = arith.constant 6.250000e-02 : f32
    %25 = vector.broadcast %cst_21 : f32 to vector<1x128xf32>
    %26 = arith.mulf %24, %25 : vector<1x128xf32>
    %c0_22 = arith.constant 0 : index
    %c0_23 = arith.constant 0 : index
    %27 = vector.load %arg6[%c0_22, %c0_23] : memref<128x128xf32, #tpu.memory_space<vmem>>, vector<128x128xf32>
    %cst_24 = arith.constant dense<0.000000e+00> : vector<1x128xf32>
    %28 = tpu.matmul %26, %27, %cst_24 {dimension_numbers = #tpu.dot_dimension_numbers<[1], [0], [0], [1], [0, 0, 1, 1], [], []>} : vector<1x128xf32>, vector<128x128xf32>, vector<1x128xf32> -> vector<1x128xf32>
    %c0_25 = arith.constant 0 : index
    %c0_26 = arith.constant 0 : index
    %29 = vector.load %arg7[%c0_25, %c0_26] : memref<1x128xf32, #tpu.memory_space<vmem>>, vector<1x128xf32>
    %30 = arith.addf %28, %29 : vector<1x128xf32>
    %c0_27 = arith.constant 0 : index
    %c0_28 = arith.constant 0 : index
    %31 = vector.load %arg9[%c0_27, %c0_28] : memref<1x128xf32, #tpu.memory_space<vmem>>, vector<1x128xf32>
    tpu.vector_store %arg9[%c0_27, %c0_28], %30 {strides = array<i32>} : memref<1x128xf32, #tpu.memory_space<vmem>>, vector<1x128xf32>,
    return
  }
}

</mosaic_0001>

<llo_original>
// kernel: gnn_forward.1
$region0: #{gnn_forward.1}
  #allocation0 [shape = 'u32[]', space=smem, size = 0x4, offset = 0x4, fixed_abs, tag = 'smem constant byte address 0x4 - core index']
  #allocation1 [shape = 'u32[144,128]{1,0:T(1,128)}', space=vmem, size = 0x12000, scoped, tag = 'internal scratch']
  %s0 = inlined_call_operand.vmem [shape: bf16[128,128], index: 0, kind: input, shape index: {}]
  %s1 = inlined_call_operand.vmem [shape: bf16[128,128], index: 1, kind: input, shape index: {}]
  %s2 = inlined_call_operand.vmem [shape: bf16[128,128], index: 2, kind: input, shape index: {}]
  %s3 = inlined_call_operand.vmem [shape: f32[1,128], index: 3, kind: input, shape index: {}]
  %s4 = inlined_call_operand.vmem [shape: bf16[128,128], index: 4, kind: input, shape index: {}]
  %s5 = inlined_call_operand.vmem [shape: f32[1,128], index: 5, kind: input, shape index: {}]
  %s6 = inlined_call_operand.vmem [shape: f32[128,128], index: 6, kind: input, shape index: {}]
  %s7 = inlined_call_operand.vmem [shape: f32[1,128], index: 7, kind: input, shape index: {}]
  %s8 = inlined_call_operand.vmem [shape: bf16[1,128], index: 8, kind: input, shape index: {}]
  %s9 = inlined_call_operand.vmem [shape: f32[1,128], index: 9, kind: output, shape index: {}]
  %s10 = sld [smem:[#allocation0]]
  $region46: #{gnn_forward.1} parent=0
    _
  %s12 = ssub.s32 1, %s10
  %s13 = scalar_select 0, %s12, %s10
  // Predicated region
  $region2: #{gnn_forward.1} parent=0 // pred_check
    _
  $region3: #{gnn_forward.1} parent=0 // pred_check_branch
    %15 = sbr.rel (0) target = $region5
  $region4: #{gnn_forward.1} parent=0 // pred_region
    _
  $region5: #{gnn_forward.1} parent=0 // pred_fallthru
    _
  // Predicated region
  $region6: #{gnn_forward.1} parent=0 // pred_check
    _
  $region7: #{gnn_forward.1} parent=0 // pred_check_branch
    %17 = sbr.rel (0) target = $region9
  $region8: #{gnn_forward.1} parent=0 // pred_region
    _
  $region9: #{gnn_forward.1} parent=0 // pred_fallthru
    _
  // Predicated region
  $region10: #{gnn_forward.1} parent=0 // pred_check
    _
  $region11: #{gnn_forward.1} parent=0 // pred_check_branch
    %19 = sbr.rel (0) target = $region13
  $region12: #{gnn_forward.1} parent=0 // pred_region
    _
  $region13: #{gnn_forward.1} parent=0 // pred_fallthru
    _
  // Predicated region
  $region14: #{gnn_forward.1} parent=0 // pred_check
    _
  $region15: #{gnn_forward.1} parent=0 // pred_check_branch
    %21 = sbr.rel (0) target = $region17
  $region16: #{gnn_forward.1} parent=0 // pred_region
    _
  $region17: #{gnn_forward.1} parent=0 // pred_fallthru
    _
  // Predicated region
  $region18: #{gnn_forward.1} parent=0 // pred_check
    _
  $region19: #{gnn_forward.1} parent=0 // pred_check_branch
    %23 = sbr.rel (0) target = $region21
  $region20: #{gnn_forward.1} parent=0 // pred_region
    _
  $region21: #{gnn_forward.1} parent=0 // pred_fallthru
    _
  // Predicated region
  $region22: #{gnn_forward.1} parent=0 // pred_check
    _
  $region23: #{gnn_forward.1} parent=0 // pred_check_branch
    %25 = sbr.rel (0) target = $region25
  $region24: #{gnn_forward.1} parent=0 // pred_region
    _
  $region25: #{gnn_forward.1} parent=0 // pred_fallthru
    _
  // Predicated region
  $region26: #{gnn_forward.1} parent=0 // pred_check
    _
  $region27: #{gnn_forward.1} parent=0 // pred_check_branch
    %27 = sbr.rel (0) target = $region29
  $region28: #{gnn_forward.1} parent=0 // pred_region
    _
  $region29: #{gnn_forward.1} parent=0 // pred_fallthru
    _
  // Predicated region
  $region30: #{gnn_forward.1} parent=0 // pred_check
    _
  $region31: #{gnn_forward.1} parent=0 // pred_check_branch
    %29 = sbr.rel (0) target = $region33
  $region32: #{gnn_forward.1} parent=0 // pred_region
    _
  $region33: #{gnn_forward.1} parent=0 // pred_fallthru
    _
  // Predicated region
  $region34: #{gnn_forward.1} parent=0 // pred_check
    _
  $region35: #{gnn_forward.1} parent=0 // pred_check_branch
    %31 = sbr.rel (0) target = $region37
  $region36: #{gnn_forward.1} parent=0 // pred_region
    _
  $region37: #{gnn_forward.1} parent=0 // pred_fallthru
    _
  %v33 = vld [vmem:[%s1] sm:$0xf]
  %v34 = vld [vmem:[%s1 + $0x4] sm:$0xf]
  %v35 = vld [vmem:[%s1 + $0x8] sm:$0xf]
  %v36 = vld [vmem:[%s1 + $0xc] sm:$0xf]
  %v37 = vld [vmem:[%s1 + $0x10] sm:$0xf]
  %v38 = vld [vmem:[%s1 + $0x14] sm:$0xf]
  %v39 = vld [vmem:[%s1 + $0x18] sm:$0xf]
  %v40 = vld [vmem:[%s1 + $0x1c] sm:$0xf]
  %v41 = vld [vmem:[%s1 + $0x20] sm:$0xf]
  %v42 = vld [vmem:[%s1 + $0x24] sm:$0xf]
  %v43 = vld [vmem:[%s1 + $0x28] sm:$0xf]
  %v44 = vld [vmem:[%s1 + $0x2c] sm:$0xf]
  %v45 = vld [vmem:[%s1 + $0x30] sm:$0xf]
  %v46 = vld [vmem:[%s1 + $0x34] sm:$0xf]
  %v47 = vld [vmem:[%s1 + $0x38] sm:$0xf]
  %v48 = vld [vmem:[%s1 + $0x3c] sm:$0xf]
  %v49 = vld [vmem:[%s2] sm:$0xf]
  %v50 = vld [vmem:[%s2 + $0x4] sm:$0xf]
  %v51 = vld [vmem:[%s2 + $0x8] sm:$0xf]
  %v52 = vld [vmem:[%s2 + $0xc] sm:$0xf]
  %v53 = vld [vmem:[%s2 + $0x10] sm:$0xf]
  %v54 = vld [vmem:[%s2 + $0x14] sm:$0xf]
  %v55 = vld [vmem:[%s2 + $0x18] sm:$0xf]
  %v56 = vld [vmem:[%s2 + $0x1c] sm:$0xf]
  %v57 = vld [vmem:[%s2 + $0x20] sm:$0xf]
  %v58 = vld [vmem:[%s2 + $0x24] sm:$0xf]
  %v59 = vld [vmem:[%s2 + $0x28] sm:$0xf]
  %v60 = vld [vmem:[%s2 + $0x2c] sm:$0xf]
  %v61 = vld [vmem:[%s2 + $0x30] sm:$0xf]
  %v62 = vld [vmem:[%s2 + $0x34] sm:$0xf]
  %v63 = vld [vmem:[%s2 + $0x38] sm:$0xf]
  %v64 = vld [vmem:[%s2 + $0x3c] sm:$0xf]
  %v81 = vunpack.c.l.b16 %v33
  %v82 = vunpack.c.l.b16 %v34
  %v83 = vunpack.c.l.b16 %v35
  %v84 = vunpack.c.l.b16 %v36
  %v85 = vunpack.c.l.b16 %v37
  %v86 = vunpack.c.l.b16 %v38
  %v87 = vunpack.c.l.b16 %v39
  %v88 = vunpack.c.l.b16 %v40
  %v89 = vunpack.c.l.b16 %v41
  %v90 = vunpack.c.l.b16 %v42
  %v91 = vunpack.c.l.b16 %v43
  %v92 = vunpack.c.l.b16 %v44
  %v93 = vunpack.c.l.b16 %v45
  %v94 = vunpack.c.l.b16 %v46
  %v95 = vunpack.c.l.b16 %v47
  %v96 = vunpack.c.l.b16 %v48
  %v97 = vpack.c.b16 %v82, %v81
  %v98 = vpack.c.b16 %v84, %v83
  %v99 = vpack.c.b16 %v86, %v85
  %v100 = vpack.c.b16 %v88, %v87
  %v101 = vpack.c.b16 %v90, %v89
  %v102 = vpack.c.b16 %v92, %v91
  %v103 = vpack.c.b16 %v94, %v93
  %v104 = vpack.c.b16 %v96, %v95
  %v129 = vunpack.c.l.b16 %v49
  %v130 = vunpack.c.l.b16 %v50
  %v131 = vunpack.c.l.b16 %v51
  %v132 = vunpack.c.l.b16 %v52
  %v133 = vunpack.c.l.b16 %v53
  %v134 = vunpack.c.l.b16 %v54
  %v135 = vunpack.c.l.b16 %v55
  %v136 = vunpack.c.l.b16 %v56
  %v137 = vunpack.c.l.b16 %v57
  %v138 = vunpack.c.l.b16 %v58
  %v139 = vunpack.c.l.b16 %v59
  %v140 = vunpack.c.l.b16 %v60
  %v141 = vunpack.c.l.b16 %v61
  %v142 = vunpack.c.l.b16 %v62
  %v143 = vunpack.c.l.b16 %v63
  %v144 = vunpack.c.l.b16 %v64
  %v145 = vpack.c.b16 %v130, %v129
  %v146 = vpack.c.b16 %v132, %v131
  %v147 = vpack.c.b16 %v134, %v133
  %v148 = vpack.c.b16 %v136, %v135
  %v149 = vpack.c.b16 %v138, %v137
  %v150 = vpack.c.b16 %v140, %v139
  %v151 = vpack.c.b16 %v142, %v141
  %v152 = vpack.c.b16 %v144, %v143
  %161 = vmatprep.subr.bf16.mxu0 0
  %162 = vmatpush1.bf16.msra.mxu0 %v145
  %163 = vmatprep.subr.bf16.mxu0 0
  %164 = vmatpush1.bf16.msra.mxu0 %v146
  %165 = vmatprep.subr.bf16.mxu0 0
  %166 = vmatpush1.bf16.msra.mxu0 %v147
  %167 = vmatprep.subr.bf16.mxu0 0
  %168 = vmatpush1.bf16.msra.mxu0 %v148
  %169 = vmatprep.subr.bf16.mxu0 0
  %170 = vmatpush1.bf16.msra.mxu0 %v149
  %171 = vmatprep.subr.bf16.mxu0 0
  %172 = vmatpush1.bf16.msra.mxu0 %v150
  %173 = vmatprep.subr.bf16.mxu0 0
  %174 = vmatpush1.bf16.msra.mxu0 %v151
  %175 = vmatprep.subr.bf16.mxu0 0
  %176 = vmatpush1.bf16.msra.mxu0 %v152
  %177 = vmatprep.subr.bf16.mxu0 0
  %178 = vmatpush1.bf16.msra.mxu0 0
  %179 = vmatprep.subr.bf16.mxu0 0
  %180 = vmatpush1.bf16.msra.mxu0 0
  %181 = vmatprep.subr.bf16.mxu0 0
  %182 = vmatpush1.bf16.msra.mxu0 0
  %183 = vmatprep.subr.bf16.mxu0 0
  %184 = vmatpush1.bf16.msra.mxu0 0
  %185 = vmatprep.subr.bf16.mxu0 0
  %186 = vmatpush1.bf16.msra.mxu0 0
  %187 = vmatprep.subr.bf16.mxu0 0
  %188 = vmatpush1.bf16.msra.mxu0 0
  %189 = vmatprep.subr.bf16.mxu0 0
  %190 = vmatpush1.bf16.msra.mxu0 0
  %191 = vmatprep.subr.bf16.mxu0 0
  %192 = vmatpush1.bf16.msra.mxu0 0
  %193 = vmatprep.mubr.bf16.mxu0 0
  %194 = vmatmul.mubr.bf16.gmra.mrb[0].mxu0 %v97
  %v195 = vpop.f32.mrb[0].mxu0
  %v196 = vadd.f32 0.0, %v195
  %v197 = vpop.f32.mrb[0].mxu0
  %v198 = vpop.f32.mrb[0].mxu0
  %v199 = vadd.f32 0.0, %v198
  %v200 = vpop.f32.mrb[0].mxu0
  %201 = vmatprep.mubr.bf16.mxu0 0
  %202 = vmatmul.mubr.bf16.gmra.mrb[0].mxu0 %v98
  %v203 = vpop.f32.mrb[0].mxu0
  %v204 = vadd.f32 0.0, %v203
  %v205 = vpop.f32.mrb[0].mxu0
  %v206 = vpop.f32.mrb[0].mxu0
  %v207 = vadd.f32 0.0, %v206
  %v208 = vpop.f32.mrb[0].mxu0
  %209 = vmatprep.mubr.bf16.mxu0 0
  %210 = vmatmul.mubr.bf16.gmra.mrb[0].mxu0 %v99
  %v211 = vpop.f32.mrb[0].mxu0
  %v212 = vadd.f32 0.0, %v211
  %v213 = vpop.f32.mrb[0].mxu0
  %v214 = vpop.f32.mrb[0].mxu0
  %v215 = vadd.f32 0.0, %v214
  %v216 = vpop.f32.mrb[0].mxu0
  %217 = vmatprep.mubr.bf16.mxu0 0
  %218 = vmatmul.mubr.bf16.gmra.mrb[0].mxu0 %v100
  %v219 = vpop.f32.mrb[0].mxu0
  %v220 = vadd.f32 0.0, %v219
  %v221 = vpop.f32.mrb[0].mxu0
  %v222 = vpop.f32.mrb[0].mxu0
  %v223 = vadd.f32 0.0, %v222
  %v224 = vpop.f32.mrb[0].mxu0
  %225 = vmatprep.mubr.bf16.mxu0 0
  %226 = vmatmul.mubr.bf16.gmra.mrb[0].mxu0 %v101
  %v227 = vpop.f32.mrb[0].mxu0
  %v228 = vadd.f32 0.0, %v227
  %v229 = vpop.f32.mrb[0].mxu0
  %v230 = vpop.f32.mrb[0].mxu0
  %v231 = vadd.f32 0.0, %v230
  %v232 = vpop.f32.mrb[0].mxu0
  %233 = vmatprep.mubr.bf16.mxu0 0
  %234 = vmatmul.mubr.bf16.gmra.mrb[0].mxu0 %v102
  %v235 = vpop.f32.mrb[0].mxu0
  %v236 = vadd.f32 0.0, %v235
  %v237 = vpop.f32.mrb[0].mxu0
  %v238 = vpop.f32.mrb[0].mxu0
  %v239 = vadd.f32 0.0, %v238
  %v240 = vpop.f32.mrb[0].mxu0
  %241 = vmatprep.mubr.bf16.mxu0 0
  %242 = vmatmul.mubr.bf16.gmra.mrb[0].mxu0 %v103
  %v243 = vpop.f32.mrb[0].mxu0
  %v244 = vadd.f32 0.0, %v243
  %v245 = vpop.f32.mrb[0].mxu0
  %v246 = vpop.f32.mrb[0].mxu0
  %v247 = vadd.f32 0.0, %v246
  %v248 = vpop.f32.mrb[0].mxu0
  %249 = vmatprep.mubr.bf16.mxu0 0
  %250 = vmatmul.mubr.bf16.gmra.mrb[0].mxu0 %v104
  %v251 = vpop.f32.mrb[0].mxu0
  %v252 = vadd.f32 0.0, %v251
  %v253 = vpop.f32.mrb[0].mxu0
  %v254 = vpop.f32.mrb[0].mxu0
  %v255 = vadd.f32 0.0, %v254
  %v256 = vpop.f32.mrb[0].mxu0
  %257 = vdwg.mxu0
  %v258 = vpack.c.bf16 %v199, %v196
  %v259 = vpack.c.bf16 %v207, %v204
  %v260 = vpack.c.bf16 %v215, %v212
  %v261 = vpack.c.bf16 %v223, %v220
  %v262 = vpack.c.bf16 %v231, %v228
  %v263 = vpack.c.bf16 %v239, %v236
  %v264 = vpack.c.bf16 %v247, %v244
  %v265 = vpack.c.bf16 %v255, %v252
  %v266 = vld [vmem:[%s0] sm:$0xf]
  %v267 = vld [vmem:[%s0 + $0x4] sm:$0xf]
  %v268 = vld [vmem:[%s0 + $0x8] sm:$0xf]
  %v269 = vld [vmem:[%s0 + $0xc] sm:$0xf]
  %v270 = vld [vmem:[%s0 + $0x10] sm:$0xf]
  %v271 = vld [vmem:[%s0 + $0x14] sm:$0xf]
  %v272 = vld [vmem:[%s0 + $0x18] sm:$0xf]
  %v273 = vld [vmem:[%s0 + $0x1c] sm:$0xf]
  %v274 = vld [vmem:[%s0 + $0x20] sm:$0xf]
  %v275 = vld [vmem:[%s0 + $0x24] sm:$0xf]
  %v276 = vld [vmem:[%s0 + $0x28] sm:$0xf]
  %v277 = vld [vmem:[%s0 + $0x2c] sm:$0xf]
  %v278 = vld [vmem:[%s0 + $0x30] sm:$0xf]
  %v279 = vld [vmem:[%s0 + $0x34] sm:$0xf]
  %v280 = vld [vmem:[%s0 + $0x38] sm:$0xf]
  %v281 = vld [vmem:[%s0 + $0x3c] sm:$0xf]
  %v282 = vld [vmem:[%s3] sm:$0x1]
  %v284 = vlaneseq
  %v285 = vshrl.u32 %v284, 7
  %v286 = vsub.s32 0, %v285
  %v287 = vrot.slane %v282, %v286
  %v305 = vunpack.c.l.b16 %v266
  %v306 = vunpack.c.l.b16 %v267
  %v307 = vunpack.c.l.b16 %v268
  %v308 = vunpack.c.l.b16 %v269
  %v309 = vunpack.c.l.b16 %v270
  %v310 = vunpack.c.l.b16 %v271
  %v311 = vunpack.c.l.b16 %v272
  %v312 = vunpack.c.l.b16 %v273
  %v313 = vunpack.c.l.b16 %v274
  %v314 = vunpack.c.l.b16 %v275
  %v315 = vunpack.c.l.b16 %v276
  %v316 = vunpack.c.l.b16 %v277
  %v317 = vunpack.c.l.b16 %v278
  %v318 = vunpack.c.l.b16 %v279
  %v319 = vunpack.c.l.b16 %v280
  %v320 = vunpack.c.l.b16 %v281
  %v321 = vpack.c.b16 %v306, %v305
  %v322 = vpack.c.b16 %v308, %v307
  %v323 = vpack.c.b16 %v310, %v309
  %v324 = vpack.c.b16 %v312, %v311
  %v325 = vpack.c.b16 %v314, %v313
  %v326 = vpack.c.b16 %v316, %v315
  %v327 = vpack.c.b16 %v318, %v317
  %v328 = vpack.c.b16 %v320, %v319
  %337 = vmatprep.subr.bf16.mxu0 0
  %338 = vmatpush1.bf16.msra.mxu0 %v258
  %339 = vmatprep.subr.bf16.mxu0 0
  %340 = vmatpush1.bf16.msra.mxu0 %v259
  %341 = vmatprep.subr.bf16.mxu0 0
  %342 = vmatpush1.bf16.msra.mxu0 %v260
  %343 = vmatprep.subr.bf16.mxu0 0
  %344 = vmatpush1.bf16.msra.mxu0 %v261
  %345 = vmatprep.subr.bf16.mxu0 0
  %346 = vmatpush1.bf16.msra.mxu0 %v262
  %347 = vmatprep.subr.bf16.mxu0 0
  %348 = vmatpush1.bf16.msra.mxu0 %v263
  %349 = vmatprep.subr.bf16.mxu0 0
  %350 = vmatpush1.bf16.msra.mxu0 %v264
  %351 = vmatprep.subr.bf16.mxu0 0
  %352 = vmatpush1.bf16.msra.mxu0 %v265
  %353 = vmatprep.subr.bf16.mxu0 0
  %354 = vmatpush1.bf16.msra.mxu0 0
  %355 = vmatprep.subr.bf16.mxu0 0
  %356 = vmatpush1.bf16.msra.mxu0 0
  %357 = vmatprep.subr.bf16.mxu0 0
  %358 = vmatpush1.bf16.msra.mxu0 0
  %359 = vmatprep.subr.bf16.mxu0 0
  %360 = vmatpush1.bf16.msra.mxu0 0
  %361 = vmatprep.subr.bf16.mxu0 0
  %362 = vmatpush1.bf16.msra.mxu0 0
  %363 = vmatprep.subr.bf16.mxu0 0
  %364 = vmatpush1.bf16.msra.mxu0 0
  %365 = vmatprep.subr.bf16.mxu0 0
  %366 = vmatpush1.bf16.msra.mxu0 0
  %367 = vmatprep.subr.bf16.mxu0 0
  %368 = vmatpush1.bf16.msra.mxu0 0
  %369 = vmatprep.mubr.bf16.mxu0 0
  %370 = vmatmul.mubr.bf16.gmra.mrb[0].mxu0 %v321
  %v371 = vpop.f32.mrb[0].mxu0
  %v372 = vadd.f32 %v287, %v371
  %v373 = vpop.f32.mrb[0].mxu0
  %v374 = vpop.f32.mrb[0].mxu0
  %v375 = vadd.f32 %v287, %v374
  %v376 = vpop.f32.mrb[0].mxu0
  %377 = vmatprep.mubr.bf16.mxu0 0
  %378 = vmatmul.mubr.bf16.gmra.mrb[0].mxu0 %v322
  %v379 = vpop.f32.mrb[0].mxu0
  %v380 = vadd.f32 %v287, %v379
  %v381 = vpop.f32.mrb[0].mxu0
  %v382 = vpop.f32.mrb[0].mxu0
  %v383 = vadd.f32 %v287, %v382
  %v384 = vpop.f32.mrb[0].mxu0
  %385 = vmatprep.mubr.bf16.mxu0 0
  %386 = vmatmul.mubr.bf16.gmra.mrb[0].mxu0 %v323
  %v387 = vpop.f32.mrb[0].mxu0
  %v388 = vadd.f32 %v287, %v387
  %v389 = vpop.f32.mrb[0].mxu0
  %v390 = vpop.f32.mrb[0].mxu0
  %v391 = vadd.f32 %v287, %v390
  %v392 = vpop.f32.mrb[0].mxu0
  %393 = vmatprep.mubr.bf16.mxu0 0
  %394 = vmatmul.mubr.bf16.gmra.mrb[0].mxu0 %v324
  %v395 = vpop.f32.mrb[0].mxu0
  %v396 = vadd.f32 %v287, %v395
  %v397 = vpop.f32.mrb[0].mxu0
  %v398 = vpop.f32.mrb[0].mxu0
  %v399 = vadd.f32 %v287, %v398
  %v400 = vpop.f32.mrb[0].mxu0
  %401 = vmatprep.mubr.bf16.mxu0 0
  %402 = vmatmul.mubr.bf16.gmra.mrb[0].mxu0 %v325
  %v403 = vpop.f32.mrb[0].mxu0
  %v404 = vadd.f32 %v287, %v403
  %v405 = vpop.f32.mrb[0].mxu0
  %v406 = vpop.f32.mrb[0].mxu0
  %v407 = vadd.f32 %v287, %v406
  %v408 = vpop.f32.mrb[0].mxu0
  %409 = vmatprep.mubr.bf16.mxu0 0
  %410 = vmatmul.mubr.bf16.gmra.mrb[0].mxu0 %v326
  %v411 = vpop.f32.mrb[0].mxu0
  %v412 = vadd.f32 %v287, %v411
  %v413 = vpop.f32.mrb[0].mxu0
  %v414 = vpop.f32.mrb[0].mxu0
  %v415 = vadd.f32 %v287, %v414
  %v416 = vpop.f32.mrb[0].mxu0
  %417 = vmatprep.mubr.bf16.mxu0 0
  %418 = vmatmul.mubr.bf16.gmra.mrb[0].mxu0 %v327
  %v419 = vpop.f32.mrb[0].mxu0
  %v420 = vadd.f32 %v287, %v419
  %v421 = vpop.f32.mrb[0].mxu0
  %v422 = vpop.f32.mrb[0].mxu0
  %v423 = vadd.f32 %v287, %v422
  %v424 = vpop.f32.mrb[0].mxu0
  %425 = vmatprep.mubr.bf16.mxu0 0
  %426 = vmatmul.mubr.bf16.gmra.mrb[0].mxu0 %v328
  %v427 = vpop.f32.mrb[0].mxu0
  %v428 = vadd.f32 %v287, %v427
  %v429 = vpop.f32.mrb[0].mxu0
  %v430 = vpop.f32.mrb[0].mxu0
  %v431 = vadd.f32 %v287, %v430
  %v432 = vpop.f32.mrb[0].mxu0
  %433 = vdwg.mxu0
  %v434 = vmax.f32 %v372, 0.0
  %v435 = vmax.f32 %v375, 0.0
  %v436 = vmax.f32 %v380, 0.0
  %v437 = vmax.f32 %v383, 0.0
  %v438 = vmax.f32 %v388, 0.0
  %v439 = vmax.f32 %v391, 0.0
  %v440 = vmax.f32 %v396, 0.0
  %v441 = vmax.f32 %v399, 0.0
  %v442 = vmax.f32 %v404, 0.0
  %v443 = vmax.f32 %v407, 0.0
  %v444 = vmax.f32 %v412, 0.0
  %v445 = vmax.f32 %v415, 0.0
  %v446 = vmax.f32 %v420, 0.0
  %v447 = vmax.f32 %v423, 0.0
  %v448 = vmax.f32 %v428, 0.0
  %v449 = vmax.f32 %v431, 0.0
  %v450 = vpack.c.bf16 %v435, %v434
  %v451 = vpack.c.bf16 %v437, %v436
  %v452 = vpack.c.bf16 %v439, %v438
  %v453 = vpack.c.bf16 %v441, %v440
  %v454 = vpack.c.bf16 %v443, %v442
  %v455 = vpack.c.bf16 %v445, %v444
  %v456 = vpack.c.bf16 %v447, %v446
  %v457 = vpack.c.bf16 %v449, %v448
  %v458 = vld [vmem:[%s4] sm:$0xf]
  %v459 = vld [vmem:[%s4 + $0x4] sm:$0xf]
  %v460 = vld [vmem:[%s4 + $0x8] sm:$0xf]
  %v461 = vld [vmem:[%s4 + $0xc] sm:$0xf]
  %v462 = vld [vmem:[%s4 + $0x10] sm:$0xf]
  %v463 = vld [vmem:[%s4 + $0x14] sm:$0xf]
  %v464 = vld [vmem:[%s4 + $0x18] sm:$0xf]
  %v465 = vld [vmem:[%s4 + $0x1c] sm:$0xf]
  %v466 = vld [vmem:[%s4 + $0x20] sm:$0xf]
  %v467 = vld [vmem:[%s4 + $0x24] sm:$0xf]
  %v468 = vld [vmem:[%s4 + $0x28] sm:$0xf]
  %v469 = vld [vmem:[%s4 + $0x2c] sm:$0xf]
  %v470 = vld [vmem:[%s4 + $0x30] sm:$0xf]
  %v471 = vld [vmem:[%s4 + $0x34] sm:$0xf]
  %v472 = vld [vmem:[%s4 + $0x38] sm:$0xf]
  %v473 = vld [vmem:[%s4 + $0x3c] sm:$0xf]
  %v490 = vunpack.c.l.b16 %v458
  %v491 = vunpack.c.l.b16 %v459
  %v492 = vunpack.c.l.b16 %v460
  %v493 = vunpack.c.l.b16 %v461
  %v494 = vunpack.c.l.b16 %v462
  %v495 = vunpack.c.l.b16 %v463
  %v496 = vunpack.c.l.b16 %v464
  %v497 = vunpack.c.l.b16 %v465
  %v498 = vunpack.c.l.b16 %v466
  %v499 = vunpack.c.l.b16 %v467
  %v500 = vunpack.c.l.b16 %v468
  %v501 = vunpack.c.l.b16 %v469
  %v502 = vunpack.c.l.b16 %v470
  %v503 = vunpack.c.l.b16 %v471
  %v504 = vunpack.c.l.b16 %v472
  %v505 = vunpack.c.l.b16 %v473
  %v506 = vpack.c.b16 %v491, %v490
  %v507 = vpack.c.b16 %v493, %v492
  %v508 = vpack.c.b16 %v495, %v494
  %v509 = vpack.c.b16 %v497, %v496
  %v510 = vpack.c.b16 %v499, %v498
  %v511 = vpack.c.b16 %v501, %v500
  %v512 = vpack.c.b16 %v503, %v502
  %v513 = vpack.c.b16 %v505, %v504
  %522 = vmatprep.subr.bf16.mxu0 0
  %523 = vmatpush1.bf16.msra.mxu0 %v506
  %524 = vmatprep.subr.bf16.mxu0 0
  %525 = vmatpush1.bf16.msra.mxu0 %v507
  %526 = vmatprep.subr.bf16.mxu0 0
  %527 = vmatpush1.bf16.msra.mxu0 %v508
  %528 = vmatprep.subr.bf16.mxu0 0
  %529 = vmatpush1.bf16.msra.mxu0 %v509
  %530 = vmatprep.subr.bf16.mxu0 0
  %531 = vmatpush1.bf16.msra.mxu0 %v510
  %532 = vmatprep.subr.bf16.mxu0 0
  %533 = vmatpush1.bf16.msra.mxu0 %v511
  %534 = vmatprep.subr.bf16.mxu0 0
  %535 = vmatpush1.bf16.msra.mxu0 %v512
  %536 = vmatprep.subr.bf16.mxu0 0
  %537 = vmatpush1.bf16.msra.mxu0 %v513
  %538 = vmatprep.subr.bf16.mxu0 0
  %539 = vmatpush1.bf16.msra.mxu0 0
  %540 = vmatprep.subr.bf16.mxu0 0
  %541 = vmatpush1.bf16.msra.mxu0 0
  %542 = vmatprep.subr.bf16.mxu0 0
  %543 = vmatpush1.bf16.msra.mxu0 0
  %544 = vmatprep.subr.bf16.mxu0 0
  %545 = vmatpush1.bf16.msra.mxu0 0
  %546 = vmatprep.subr.bf16.mxu0 0
  %547 = vmatpush1.bf16.msra.mxu0 0
  %548 = vmatprep.subr.bf16.mxu0 0
  %549 = vmatpush1.bf16.msra.mxu0 0
  %550 = vmatprep.subr.bf16.mxu0 0
  %551 = vmatpush1.bf16.msra.mxu0 0
  %552 = vmatprep.subr.bf16.mxu0 0
  %553 = vmatpush1.bf16.msra.mxu0 0
  %554 = vmatprep.mubr.bf16.mxu0 0
  %555 = vmatmul.mubr.bf16.gmra.mrb[0].mxu0 %v450
  %v556 = vpop.f32.mrb[0].mxu0
  %v557 = vadd.f32 0.0, %v556
  %v558 = vpop.f32.mrb[0].mxu0
  %v559 = vpop.f32.mrb[0].mxu0
  %v560 = vadd.f32 0.0, %v559
  %v561 = vpop.f32.mrb[0].mxu0
  %562 = vmatprep.mubr.bf16.mxu0 0
  %563 = vmatmul.mubr.bf16.gmra.mrb[0].mxu0 %v451
  %v564 = vpop.f32.mrb[0].mxu0
  %v565 = vadd.f32 0.0, %v564
  %v566 = vpop.f32.mrb[0].mxu0
  %v567 = vpop.f32.mrb[0].mxu0
  %v568 = vadd.f32 0.0, %v567
  %v569 = vpop.f32.mrb[0].mxu0
  %570 = vmatprep.mubr.bf16.mxu0 0
  %571 = vmatmul.mubr.bf16.gmra.mrb[0].mxu0 %v452
  %v572 = vpop.f32.mrb[0].mxu0
  %v573 = vadd.f32 0.0, %v572
  %v574 = vpop.f32.mrb[0].mxu0
  %v575 = vpop.f32.mrb[0].mxu0
  %v576 = vadd.f32 0.0, %v575
  %v577 = vpop.f32.mrb[0].mxu0
  %578 = vmatprep.mubr.bf16.mxu0 0
  %579 = vmatmul.mubr.bf16.gmra.mrb[0].mxu0 %v453
  %v580 = vpop.f32.mrb[0].mxu0
  %v581 = vadd.f32 0.0, %v580
  %v582 = vpop.f32.mrb[0].mxu0
  %v583 = vpop.f32.mrb[0].mxu0
  %v584 = vadd.f32 0.0, %v583
  %v585 = vpop.f32.mrb[0].mxu0
  %586 = vmatprep.mubr.bf16.mxu0 0
  %587 = vmatmul.mubr.bf16.gmra.mrb[0].mxu0 %v454
  %v588 = vpop.f32.mrb[0].mxu0
  %v589 = vadd.f32 0.0, %v588
  %v590 = vpop.f32.mrb[0].mxu0
  %v591 = vpop.f32.mrb[0].mxu0
  %v592 = vadd.f32 0.0, %v591
  %v593 = vpop.f32.mrb[0].mxu0
  %594 = vmatprep.mubr.bf16.mxu0 0
  %595 = vmatmul.mubr.bf16.gmra.mrb[0].mxu0 %v455
  %v596 = vpop.f32.mrb[0].mxu0
  %v597 = vadd.f32 0.0, %v596
  %v598 = vpop.f32.mrb[0].mxu0
  %v599 = vpop.f32.mrb[0].mxu0
  %v600 = vadd.f32 0.0, %v599
  %v601 = vpop.f32.mrb[0].mxu0
  %602 = vmatprep.mubr.bf16.mxu0 0
  %603 = vmatmul.mubr.bf16.gmra.mrb[0].mxu0 %v456
  %v604 = vpop.f32.mrb[0].mxu0
  %v605 = vadd.f32 0.0, %v604
  %v606 = vpop.f32.mrb[0].mxu0
  %v607 = vpop.f32.mrb[0].mxu0
  %v608 = vadd.f32 0.0, %v607
  %v609 = vpop.f32.mrb[0].mxu0
  %610 = vmatprep.mubr.bf16.mxu0 0
  %611 = vmatmul.mubr.bf16.gmra.mrb[0].mxu0 %v457
  %v612 = vpop.f32.mrb[0].mxu0
  %v613 = vadd.f32 0.0, %v612
  %v614 = vpop.f32.mrb[0].mxu0
  %v615 = vpop.f32.mrb[0].mxu0
  %v616 = vadd.f32 0.0, %v615
  %v617 = vpop.f32.mrb[0].mxu0
  %618 = vdwg.mxu0
  %v619 = vpack.c.bf16 %v560, %v557
  %v620 = vpack.c.bf16 %v568, %v565
  %v621 = vpack.c.bf16 %v576, %v573
  %v622 = vpack.c.bf16 %v584, %v581
  %v623 = vpack.c.bf16 %v592, %v589
  %v624 = vpack.c.bf16 %v600, %v597
  %v625 = vpack.c.bf16 %v608, %v605
  %v626 = vpack.c.bf16 %v616, %v613
  %v627 = vld [vmem:[%s5] sm:$0x1]
  %v629 = vlaneseq
  %v630 = vshrl.u32 %v629, 7
  %v631 = vsub.s32 0, %v630
  %v632 = vrot.slane %v627, %v631
  %634 = vmatprep.subr.bf16.mxu0 0
  %635 = vmatpush1.bf16.msra.mxu0 %v619
  %636 = vmatprep.subr.bf16.mxu0 0
  %637 = vmatpush1.bf16.msra.mxu0 %v620
  %638 = vmatprep.subr.bf16.mxu0 0
  %639 = vmatpush1.bf16.msra.mxu0 %v621
  %640 = vmatprep.subr.bf16.mxu0 0
  %641 = vmatpush1.bf16.msra.mxu0 %v622
  %642 = vmatprep.subr.bf16.mxu0 0
  %643 = vmatpush1.bf16.msra.mxu0 %v623
  %644 = vmatprep.subr.bf16.mxu0 0
  %645 = vmatpush1.bf16.msra.mxu0 %v624
  %646 = vmatprep.subr.bf16.mxu0 0
  %647 = vmatpush1.bf16.msra.mxu0 %v625
  %648 = vmatprep.subr.bf16.mxu0 0
  %649 = vmatpush1.bf16.msra.mxu0 %v626
  %650 = vmatprep.subr.bf16.mxu0 0
  %651 = vmatpush1.bf16.msra.mxu0 0
  %652 = vmatprep.subr.bf16.mxu0 0
  %653 = vmatpush1.bf16.msra.mxu0 0
  %654 = vmatprep.subr.bf16.mxu0 0
  %655 = vmatpush1.bf16.msra.mxu0 0
  %656 = vmatprep.subr.bf16.mxu0 0
  %657 = vmatpush1.bf16.msra.mxu0 0
  %658 = vmatprep.subr.bf16.mxu0 0
  %659 = vmatpush1.bf16.msra.mxu0 0
  %660 = vmatprep.subr.bf16.mxu0 0
  %661 = vmatpush1.bf16.msra.mxu0 0
  %662 = vmatprep.subr.bf16.mxu0 0
  %663 = vmatpush1.bf16.msra.mxu0 0
  %664 = vmatprep.subr.bf16.mxu0 0
  %665 = vmatpush1.bf16.msra.mxu0 0
  %666 = vmatprep.mubr.bf16.mxu0 0
  %667 = vmatmul.mubr.bf16.gmra.mrb[0].mxu0 %v321
  %v668 = vpop.f32.mrb[0].mxu0
  %v669 = vadd.f32 %v632, %v668
  %v670 = vpop.f32.mrb[0].mxu0
  %v671 = vpop.f32.mrb[0].mxu0
  %v672 = vadd.f32 %v632, %v671
  %v673 = vpop.f32.mrb[0].mxu0
  %674 = vmatprep.mubr.bf16.mxu0 0
  %675 = vmatmul.mubr.bf16.gmra.mrb[0].mxu0 %v322
  %v676 = vpop.f32.mrb[0].mxu0
  %v677 = vadd.f32 %v632, %v676
  %v678 = vpop.f32.mrb[0].mxu0
  %v679 = vpop.f32.mrb[0].mxu0
  %v680 = vadd.f32 %v632, %v679
  %v681 = vpop.f32.mrb[0].mxu0
  %682 = vmatprep.mubr.bf16.mxu0 0
  %683 = vmatmul.mubr.bf16.gmra.mrb[0].mxu0 %v323
  %v684 = vpop.f32.mrb[0].mxu0
  %v685 = vadd.f32 %v632, %v684
  %v686 = vpop.f32.mrb[0].mxu0
  %v687 = vpop.f32.mrb[0].mxu0
  %v688 = vadd.f32 %v632, %v687
  %v689 = vpop.f32.mrb[0].mxu0
  %690 = vmatprep.mubr.bf16.mxu0 0
  %691 = vmatmul.mubr.bf16.gmra.mrb[0].mxu0 %v324
  %v692 = vpop.f32.mrb[0].mxu0
  %v693 = vadd.f32 %v632, %v692
  %v694 = vpop.f32.mrb[0].mxu0
  %v695 = vpop.f32.mrb[0].mxu0
  %v696 = vadd.f32 %v632, %v695
  %v697 = vpop.f32.mrb[0].mxu0
  %698 = vmatprep.mubr.bf16.mxu0 0
  %699 = vmatmul.mubr.bf16.gmra.mrb[0].mxu0 %v325
  %v700 = vpop.f32.mrb[0].mxu0
  %v701 = vadd.f32 %v632, %v700
  %v702 = vpop.f32.mrb[0].mxu0
  %v703 = vpop.f32.mrb[0].mxu0
  %v704 = vadd.f32 %v632, %v703
  %v705 = vpop.f32.mrb[0].mxu0
  %706 = vmatprep.mubr.bf16.mxu0 0
  %707 = vmatmul.mubr.bf16.gmra.mrb[0].mxu0 %v326
  %v708 = vpop.f32.mrb[0].mxu0
  %v709 = vadd.f32 %v632, %v708
  %v710 = vpop.f32.mrb[0].mxu0
  %v711 = vpop.f32.mrb[0].mxu0
  %v712 = vadd.f32 %v632, %v711
  %v713 = vpop.f32.mrb[0].mxu0
  %714 = vmatprep.mubr.bf16.mxu0 0
  %715 = vmatmul.mubr.bf16.gmra.mrb[0].mxu0 %v327
  %v716 = vpop.f32.mrb[0].mxu0
  %v717 = vadd.f32 %v632, %v716
  %v718 = vpop.f32.mrb[0].mxu0
  %v719 = vpop.f32.mrb[0].mxu0
  %v720 = vadd.f32 %v632, %v719
  %v721 = vpop.f32.mrb[0].mxu0
  %722 = vmatprep.mubr.bf16.mxu0 0
  %723 = vmatmul.mubr.bf16.gmra.mrb[0].mxu0 %v328
  %v724 = vpop.f32.mrb[0].mxu0
  %v725 = vadd.f32 %v632, %v724
  %v726 = vpop.f32.mrb[0].mxu0
  %v727 = vpop.f32.mrb[0].mxu0
  %v728 = vadd.f32 %v632, %v727
  %v729 = vpop.f32.mrb[0].mxu0
  %730 = vdwg.mxu0
  %v731 = vmax.f32 %v669, 0.0
  %v732 = vmax.f32 %v672, 0.0
  %v733 = vmax.f32 %v677, 0.0
  %v734 = vmax.f32 %v680, 0.0
  %v735 = vmax.f32 %v685, 0.0
  %v736 = vmax.f32 %v688, 0.0
  %v737 = vmax.f32 %v693, 0.0
  %v738 = vmax.f32 %v696, 0.0
  %v739 = vmax.f32 %v701, 0.0
  %v740 = vmax.f32 %v704, 0.0
  %v741 = vmax.f32 %v709, 0.0
  %v742 = vmax.f32 %v712, 0.0
  %v743 = vmax.f32 %v717, 0.0
  %v744 = vmax.f32 %v720, 0.0
  %v745 = vmax.f32 %v725, 0.0
  %v746 = vmax.f32 %v728, 0.0
  %v747 = vpack.c.bf16 %v732, %v731
  %v748 = vpack.c.bf16 %v734, %v733
  %v749 = vpack.c.bf16 %v736, %v735
  %v750 = vpack.c.bf16 %v738, %v737
  %v751 = vpack.c.bf16 %v740, %v739
  %v752 = vpack.c.bf16 %v742, %v741
  %v753 = vpack.c.bf16 %v744, %v743
  %v754 = vpack.c.bf16 %v746, %v745
  %v755 = vld [vmem:[%s8] sm:$0x1]
  %756 = vmatprep.subr.bf16.mxu0 0
  %757 = vmatpush1.bf16.msra.mxu0 %v747
  %758 = vmatprep.subr.bf16.mxu0 0
  %759 = vmatpush1.bf16.msra.mxu0 %v748
  %760 = vmatprep.subr.bf16.mxu0 0
  %761 = vmatpush1.bf16.msra.mxu0 %v749
  %762 = vmatprep.subr.bf16.mxu0 0
  %763 = vmatpush1.bf16.msra.mxu0 %v750
  %764 = vmatprep.subr.bf16.mxu0 0
  %765 = vmatpush1.bf16.msra.mxu0 %v751
  %766 = vmatprep.subr.bf16.mxu0 0
  %767 = vmatpush1.bf16.msra.mxu0 %v752
  %768 = vmatprep.subr.bf16.mxu0 0
  %769 = vmatpush1.bf16.msra.mxu0 %v753
  %770 = vmatprep.subr.bf16.mxu0 0
  %771 = vmatpush1.bf16.msra.mxu0 %v754
  %772 = vmatprep.subr.bf16.mxu0 0
  %773 = vmatpush1.bf16.msra.mxu0 0
  %774 = vmatprep.subr.bf16.mxu0 0
  %775 = vmatpush1.bf16.msra.mxu0 0
  %776 = vmatprep.subr.bf16.mxu0 0
  %777 = vmatpush1.bf16.msra.mxu0 0
  %778 = vmatprep.subr.bf16.mxu0 0
  %779 = vmatpush1.bf16.msra.mxu0 0
  %780 = vmatprep.subr.bf16.mxu0 0
  %781 = vmatpush1.bf16.msra.mxu0 0
  %782 = vmatprep.subr.bf16.mxu0 0
  %783 = vmatpush1.bf16.msra.mxu0 0
  %784 = vmatprep.subr.bf16.mxu0 0
  %785 = vmatpush1.bf16.msra.mxu0 0
  %786 = vmatprep.subr.bf16.mxu0 0
  %787 = vmatpush1.bf16.msra.mxu0 0
  %788 = vmatprep.mubr.bf16.mxu0 0
  %789 = vmatmul.mubr.bf16.gmra.mrb[0].mxu0 %v755
  %v790 = vpop.f32.mrb[0].mxu0
  %v791 = vadd.f32 0.0, %v790
  %v792 = vpop.f32.mrb[0].mxu0
  %v793 = vpop.f32.mrb[0].mxu0
  %v794 = vpop.f32.mrb[0].mxu0
  %795 = vdwg.mxu0
  %v796 = vmul.f32 %v791, 0.0625
  %v797 = vld [vmem:[%s6] sm:$0xff]
  %v798 = vld [vmem:[%s6 + $0x8] sm:$0xff]
  %v799 = vld [vmem:[%s6 + $0x10] sm:$0xff]
  %v800 = vld [vmem:[%s6 + $0x18] sm:$0xff]
  %v801 = vld [vmem:[%s6 + $0x20] sm:$0xff]
  %v802 = vld [vmem:[%s6 + $0x28] sm:$0xff]
  %v803 = vld [vmem:[%s6 + $0x30] sm:$0xff]
  %v804 = vld [vmem:[%s6 + $0x38] sm:$0xff]
  %v805 = vld [vmem:[%s6 + $0x40] sm:$0xff]
  %v806 = vld [vmem:[%s6 + $0x48] sm:$0xff]
  %v807 = vld [vmem:[%s6 + $0x50] sm:$0xff]
  %v808 = vld [vmem:[%s6 + $0x58] sm:$0xff]
  %v809 = vld [vmem:[%s6 + $0x60] sm:$0xff]
  %v810 = vld [vmem:[%s6 + $0x68] sm:$0xff]
  %v811 = vld [vmem:[%s6 + $0x70] sm:$0xff]
  %v812 = vld [vmem:[%s6 + $0x78] sm:$0xff]
  %v813 = vld [vmem:[%s7] sm:$0x1]
  %814 = vmatprep.subr.mxu0 0.0
  %815 = vmatpush1.msra.mxu0 %v797
  %816 = vmatprep.subr.mxu0 0.0
  %817 = vmatpush1.msra.mxu0 %v798
  %818 = vmatprep.subr.mxu0 0.0
  %819 = vmatpush1.msra.mxu0 %v799
  %820 = vmatprep.subr.mxu0 0.0
  %821 = vmatpush1.msra.mxu0 %v800
  %822 = vmatprep.subr.mxu0 0.0
  %823 = vmatpush1.msra.mxu0 %v801
  %824 = vmatprep.subr.mxu0 0.0
  %825 = vmatpush1.msra.mxu0 %v802
  %826 = vmatprep.subr.mxu0 0.0
  %827 = vmatpush1.msra.mxu0 %v803
  %828 = vmatprep.subr.mxu0 0.0
  %829 = vmatpush1.msra.mxu0 %v804
  %830 = vmatprep.subr.mxu0 0.0
  %831 = vmatpush1.msra.mxu0 %v805
  %832 = vmatprep.subr.mxu0 0.0
  %833 = vmatpush1.msra.mxu0 %v806
  %834 = vmatprep.subr.mxu0 0.0
  %835 = vmatpush1.msra.mxu0 %v807
  %836 = vmatprep.subr.mxu0 0.0
  %837 = vmatpush1.msra.mxu0 %v808
  %838 = vmatprep.subr.mxu0 0.0
  %839 = vmatpush1.msra.mxu0 %v809
  %840 = vmatprep.subr.mxu0 0.0
  %841 = vmatpush1.msra.mxu0 %v810
  %842 = vmatprep.subr.mxu0 0.0
  %843 = vmatpush1.msra.mxu0 %v811
  %844 = vmatprep.subr.mxu0 0.0
  %845 = vmatpush1.msra.mxu0 %v812
  %846 = vmatprep.subr.mxu0 0.0
  %847 = vmatpush1.msra.mxu0 0.0
  %848 = vmatprep.subr.mxu0 0.0
  %849 = vmatpush1.msra.mxu0 0.0
  %850 = vmatprep.subr.mxu0 0.0
  %851 = vmatpush1.msra.mxu0 0.0
  %852 = vmatprep.subr.mxu0 0.0
  %853 = vmatpush1.msra.mxu0 0.0
  %854 = vmatprep.subr.mxu0 0.0
  %855 = vmatpush1.msra.mxu0 0.0
  %856 = vmatprep.subr.mxu0 0.0
  %857 = vmatpush1.msra.mxu0 0.0
  %858 = vmatprep.subr.mxu0 0.0
  %859 = vmatpush1.msra.mxu0 0.0
  %860 = vmatprep.subr.mxu0 0.0
  %861 = vmatpush1.msra.mxu0 0.0
  %862 = vmatprep.subr.mxu0 0.0
  %863 = vmatpush1.msra.mxu0 0.0
  %864 = vmatprep.subr.mxu0 0.0
  %865 = vmatpush1.msra.mxu0 0.0
  %866 = vmatprep.subr.mxu0 0.0
  %867 = vmatpush1.msra.mxu0 0.0
  %868 = vmatprep.subr.mxu0 0.0
  %869 = vmatpush1.msra.mxu0 0.0
  %870 = vmatprep.subr.mxu0 0.0
  %871 = vmatpush1.msra.mxu0 0.0
  %872 = vmatprep.subr.mxu0 0.0
  %873 = vmatpush1.msra.mxu0 0.0
  %874 = vmatprep.subr.mxu0 0.0
  %875 = vmatpush1.msra.mxu0 0.0
  %876 = vmatprep.subr.mxu0 0.0
  %877 = vmatpush1.msra.mxu0 0.0
  %878 = vmatprep.mubr.f32.mxu0 0.0
  %879 = vmatmul.mubr.f32.gmra.mrb[0].mxu0 %v796
  %v880 = vpop.f32.mrb[0].mxu0
  %v881 = vadd.f32 %v813, %v880
  %v882 = vpop.f32.mrb[0].mxu0
  %883 = vdwg.mxu0
  %884 = vst [vmem:[%s9] sm:$0x1] %v881
  // Predicated region
  $region38: #{gnn_forward.1} parent=0 // pred_check
    _
  $region39: #{gnn_forward.1} parent=0 // pred_check_branch
    %886 = sbr.rel (0) target = $region41
  $region40: #{gnn_forward.1} parent=0 // pred_region
    _
  $region41: #{gnn_forward.1} parent=0 // pred_fallthru
    _
  // Predicated region
  $region42: #{gnn_forward.1} parent=0 // pred_check
    _
  $region43: #{gnn_forward.1} parent=0 // pred_check_branch
    %888 = sbr.rel (0) target = $region45
  $region44: #{gnn_forward.1} parent=0 // pred_region
    _
  $region45: #{gnn_forward.1} parent=0 // pred_fallthru
    _

</llo_original>
